<compile_context>
chip_gen: v7x
topology: tpu7x:2x2x1
jax: 0.10.0
libtpu: 0.0.40
codegen_flags: <defaults>
</compile_context>

<pallas_src>
import jax
import jax.numpy as jnp
from jax import lax
from jax.experimental import pallas as pl
from jax.experimental.pallas import tpu as pltpu


def _round_up(x, m):
    return (x + m - 1) // m * m


def mlp_kernel(ids_ref, emb_ref, w1_ref, b1_ref, w2_ref, b2_ref, o_ref):
    # ids_ref: (B_pad*S, 1) int32   flattened, batch-padded token ids
    # emb_ref: (V_pad, E_pad) f32   zero-padded embedding table
    # w1_ref : (E_pad, H_pad) f32   b1_ref: (1, H_pad)
    # w2_ref : (H_pad, C_pad) f32   b2_ref: (1, C_pad)
    # o_ref  : (B_pad, C_pad) f32   lane/sublane-dense logits slab
    bs = ids_ref.shape[0]
    v_pad = emb_ref.shape[0]
    b_pad = o_ref.shape[0]
    s = bs // b_pad
    h_pad = w1_ref.shape[1]

    # Fused embedding gather: one-hot (BS, V_pad) @ table (V_pad, E_pad) on the MXU.
    ids = ids_ref[...]                                              # (BS, 1)
    vocab_iota = lax.broadcasted_iota(jnp.int32, (bs, v_pad), 1)    # (BS, V_pad)
    one_hot = (vocab_iota == ids).astype(jnp.float32)
    x = jnp.dot(one_hot, emb_ref[...],
                preferred_element_type=jnp.float32)                 # (BS, E_pad)

    # Linear(E -> H) + ReLU, whole batch in one matmul.
    h = jnp.dot(x, w1_ref[...], preferred_element_type=jnp.float32) + b1_ref[...]
    h = jnp.maximum(h, 0.0)                                         # (BS, H_pad)

    # max_pool1d over the full sequence == max over the S axis.
    pooled = jnp.max(h.reshape(b_pad, s, h_pad), axis=1)            # (B_pad, H_pad)

    # Linear(H -> C); C is padded to 128 so this is a dense MXU op and the
    # output store is an unmasked (B_pad, 128) slab.
    o_ref[...] = jnp.dot(pooled, w2_ref[...],
                         preferred_element_type=jnp.float32) + b2_ref[...]


def mlp_forward(token_ids, emb_table, w1, b1, w2, b2):
    """token_ids: (B, S) int. Weights stored as (in, out). Returns (B, C) f32 logits."""
    B, S = token_ids.shape
    V, E = emb_table.shape
    H = w1.shape[1]
    C = w2.shape[1]

    LANE, SUB = 128, 8
    B_pad = _round_up(B, SUB)     # sublane-dense output rows
    V_pad = _round_up(V, LANE)    # lane-dense one-hot gather
    E_pad = _round_up(E, LANE)
    H_pad = _round_up(H, LANE)
    C_pad = _round_up(C, LANE)    # lane-dense output store

    # Zero padding is inert: padded vocab rows are never selected, padded
    # feature columns carry zero weights/biases, padded batch rows (token id 0)
    # are sliced off at the end.
    ids = jnp.pad(token_ids.astype(jnp.int32), ((0, B_pad - B), (0, 0)))
    ids = ids.reshape(B_pad * S, 1)
    emb_p = jnp.pad(emb_table.astype(jnp.float32), ((0, V_pad - V), (0, E_pad - E)))
    w1_p = jnp.pad(w1.astype(jnp.float32), ((0, E_pad - E), (0, H_pad - H)))
    b1_p = jnp.pad(b1.astype(jnp.float32), (0, H_pad - H)).reshape(1, H_pad)
    w2_p = jnp.pad(w2.astype(jnp.float32), ((0, H_pad - H), (0, C_pad - C)))
    b2_p = jnp.pad(b2.astype(jnp.float32), (0, C_pad - C)).reshape(1, C_pad)

    vmem_spec = pl.BlockSpec(memory_space=pltpu.MemorySpace.VMEM)
    out = pl.pallas_call(
        mlp_kernel,
        out_shape=jax.ShapeDtypeStruct((B_pad, C_pad), jnp.float32),
        in_specs=[vmem_spec] * 6,
        out_specs=vmem_spec,
    )(ids, emb_p, w1_p, b1_p, w2_p, b2_p)
    return out[:B, :C]


if __name__ == "__main__":
    # Small config consistent with the module.
    B = 2          # batch
    S = 8          # sequence length
    VOCAB = 50     # vocab_num
    E = 32         # embedding_dim
    H = 32         # hidden_size
    C = 4          # class_num

    key = jax.random.PRNGKey(0)
    k_emb, k_w1, k_b1, k_w2, k_b2, k_ids = jax.random.split(key, 6)

    # torch.nn.init.normal_(mean=0, std=0.01)-style init.
    emb_table = 0.01 * jax.random.normal(k_emb, (VOCAB, E), dtype=jnp.float32)
    w1 = 0.01 * jax.random.normal(k_w1, (E, H), dtype=jnp.float32)   # (in, out)
    b1 = 0.01 * jax.random.normal(k_b1, (H,), dtype=jnp.float32)
    w2 = 0.01 * jax.random.normal(k_w2, (H, C), dtype=jnp.float32)   # (in, out)
    b2 = 0.01 * jax.random.normal(k_b2, (C,), dtype=jnp.float32)

    token_ids = jax.random.randint(k_ids, (B, S), 0, VOCAB, dtype=jnp.int32)

    logits = jax.jit(mlp_forward)(token_ids, emb_table, w1, b1, w2, b2)
    logits = jax.block_until_ready(logits)

    # Pure-JAX reference of the same semantics.
    emb = jnp.take(emb_table, token_ids, axis=0)               # (B, S, E)
    ref = jnp.maximum(emb @ w1 + b1, 0.0)                      # (B, S, H)
    ref = jnp.max(ref, axis=1)                                 # (B, H) max-pool over S
    ref = ref @ w2 + b2                                        # (B, C)

    assert logits.shape == (B, C)
    assert jnp.allclose(logits, ref, atol=1e-5, rtol=1e-5), (
        f"max abs err = {jnp.max(jnp.abs(logits - ref))}")

    print("KERNEL_OK")
</pallas_src>

<mosaic_0001>
module attributes {stable_mosaic.version = 11 : i64} {
  func.func @mlp_kernel(%arg0: memref<64x1xi32, #tpu.memory_space<vmem>>, %arg1: memref<128x128xf32, #tpu.memory_space<vmem>>, %arg2: memref<128x128xf32, #tpu.memory_space<vmem>>, %arg3: memref<1x128xf32, #tpu.memory_space<vmem>>, %arg4: memref<128x128xf32, #tpu.memory_space<vmem>>, %arg5: memref<1x128xf32, #tpu.memory_space<vmem>>, %arg6: memref<8x128xf32, #tpu.memory_space<vmem>>) attributes {dimension_semantics = [], scalar_prefetch = 0 : i64, scratch_operands = 0 : i64, tpu.core_type = #tpu.core_type<tc>} {
    %c0 = arith.constant 0 : index
    %c0_0 = arith.constant 0 : index
    %0 = vector.load %arg0[%c0, %c0_0] : memref<64x1xi32, #tpu.memory_space<vmem>>, vector<64x1xi32>
    %1 = tpu.iota {dimensions = array<i32: 1>} : vector<64x128xi32>
    %2 = vector.broadcast %0 : vector<64x1xi32> to vector<64x128xi32>
    %3 = arith.cmpi eq, %1, %2 : vector<64x128xi32>
    %4 = arith.extui %3 : vector<64x128xi1> to vector<64x128xi32>
    %5 = arith.sitofp %4 : vector<64x128xi32> to vector<64x128xf32>
    %c0_1 = arith.constant 0 : index
    %c0_2 = arith.constant 0 : index
    %6 = vector.load %arg1[%c0_1, %c0_2] : memref<128x128xf32, #tpu.memory_space<vmem>>, vector<128x128xf32>
    %cst = arith.constant dense<0.000000e+00> : vector<64x128xf32>
    %7 = tpu.matmul %5, %6, %cst {dimension_numbers = #tpu.dot_dimension_numbers<[1], [0], [0], [1], [0, 0, 1, 1], [], []>} : vector<64x128xf32>, vector<128x128xf32>, vector<64x128xf32> -> vector<64x128xf32>
    %c0_3 = arith.constant 0 : index
    %c0_4 = arith.constant 0 : index
    %8 = vector.load %arg2[%c0_3, %c0_4] : memref<128x128xf32, #tpu.memory_space<vmem>>, vector<128x128xf32>
    %cst_5 = arith.constant dense<0.000000e+00> : vector<64x128xf32>
    %9 = tpu.matmul %7, %8, %cst_5 {dimension_numbers = #tpu.dot_dimension_numbers<[1], [0], [0], [1], [0, 0, 1, 1], [], []>} : vector<64x128xf32>, vector<128x128xf32>, vector<64x128xf32> -> vector<64x128xf32>
    %c0_6 = arith.constant 0 : index
    %c0_7 = arith.constant 0 : index
    %10 = vector.load %arg3[%c0_6, %c0_7] : memref<1x128xf32, #tpu.memory_space<vmem>>, vector<1x128xf32>
    %11 = vector.broadcast %10 : vector<1x128xf32> to vector<64x128xf32>
    %12 = arith.addf %9, %11 : vector<64x128xf32>
    %cst_8 = arith.constant 0.000000e+00 : f32
    %13 = vector.broadcast %cst_8 : f32 to vector<64x128xf32>
    %14 = arith.maximumf %12, %13 : vector<64x128xf32>
    %15 = vector.shape_cast %14 : vector<64x128xf32> to vector<8x8x128xf32>
    %cst_9 = arith.constant dense<0xFF800000> : vector<8x128xf32>
    %16 = vector.multi_reduction <maximumf>, %15, %cst_9 [1] : vector<8x8x128xf32> to vector<8x128xf32>
    %c0_10 = arith.constant 0 : index
    %c0_11 = arith.constant 0 : index
    %17 = vector.load %arg4[%c0_10, %c0_11] : memref<128x128xf32, #tpu.memory_space<vmem>>, vector<128x128xf32>
    %cst_12 = arith.constant dense<0.000000e+00> : vector<8x128xf32>
    %18 = tpu.matmul %16, %17, %cst_12 {dimension_numbers = #tpu.dot_dimension_numbers<[1], [0], [0], [1], [0, 0, 1, 1], [], []>} : vector<8x128xf32>, vector<128x128xf32>, vector<8x128xf32> -> vector<8x128xf32>
    %c0_13 = arith.constant 0 : index
    %c0_14 = arith.constant 0 : index
    %19 = vector.load %arg5[%c0_13, %c0_14] : memref<1x128xf32, #tpu.memory_space<vmem>>, vector<1x128xf32>
    %20 = vector.broadcast %19 : vector<1x128xf32> to vector<8x128xf32>
    %21 = arith.addf %18, %20 : vector<8x128xf32>
    %c0_15 = arith.constant 0 : index
    %c0_16 = arith.constant 0 : index
    %22 = vector.load %arg6[%c0_15, %c0_16] : memref<8x128xf32, #tpu.memory_space<vmem>>, vector<8x128xf32>
    tpu.vector_store %arg6[%c0_15, %c0_16], %21 {strides = array<i32>} : memref<8x128xf32, #tpu.memory_space<vmem>>, vector<8x128xf32>,
    return
  }
}

</mosaic_0001>

<llo_original>
// kernel: mlp_forward.1
$region0: #{mlp_forward.1}
  #allocation0 [shape = 'u32[]', space=smem, size = 0x4, offset = 0x4, fixed_abs, tag = 'smem constant byte address 0x4 - core index']
  #allocation1 [shape = 'u32[144,128]{1,0:T(1,128)}', space=vmem, size = 0x12000, scoped, tag = 'internal scratch']
  %s0 = inlined_call_operand.vmem [shape: s32[64,1], index: 0, kind: input, shape index: {}]
  %s1 = inlined_call_operand.vmem [shape: f32[128,128], index: 1, kind: input, shape index: {}]
  %s2 = inlined_call_operand.vmem [shape: f32[128,128], index: 2, kind: input, shape index: {}]
  %s3 = inlined_call_operand.vmem [shape: f32[1,128], index: 3, kind: input, shape index: {}]
  %s4 = inlined_call_operand.vmem [shape: f32[128,128], index: 4, kind: input, shape index: {}]
  %s5 = inlined_call_operand.vmem [shape: f32[1,128], index: 5, kind: input, shape index: {}]
  %s6 = inlined_call_operand.vmem [shape: f32[8,128], index: 6, kind: output, shape index: {}]
  %s7 = sld [smem:[#allocation0]]
  $region34: #{mlp_forward.1} parent=0
    _
  %s9 = ssub.s32 1, %s7
  %s10 = scalar_select 0, %s9, %s7
  // Predicated region
  $region2: #{mlp_forward.1} parent=0 // pred_check
    _
  $region3: #{mlp_forward.1} parent=0 // pred_check_branch
    %12 = sbr.rel (0) target = $region5
  $region4: #{mlp_forward.1} parent=0 // pred_region
    _
  $region5: #{mlp_forward.1} parent=0 // pred_fallthru
    _
  // Predicated region
  $region6: #{mlp_forward.1} parent=0 // pred_check
    _
  $region7: #{mlp_forward.1} parent=0 // pred_check_branch
    %14 = sbr.rel (0) target = $region9
  $region8: #{mlp_forward.1} parent=0 // pred_region
    _
  $region9: #{mlp_forward.1} parent=0 // pred_fallthru
    _
  // Predicated region
  $region10: #{mlp_forward.1} parent=0 // pred_check
    _
  $region11: #{mlp_forward.1} parent=0 // pred_check_branch
    %16 = sbr.rel (0) target = $region13
  $region12: #{mlp_forward.1} parent=0 // pred_region
    _
  $region13: #{mlp_forward.1} parent=0 // pred_fallthru
    _
  // Predicated region
  $region14: #{mlp_forward.1} parent=0 // pred_check
    _
  $region15: #{mlp_forward.1} parent=0 // pred_check_branch
    %18 = sbr.rel (0) target = $region17
  $region16: #{mlp_forward.1} parent=0 // pred_region
    _
  $region17: #{mlp_forward.1} parent=0 // pred_fallthru
    _
  // Predicated region
  $region18: #{mlp_forward.1} parent=0 // pred_check
    _
  $region19: #{mlp_forward.1} parent=0 // pred_check_branch
    %20 = sbr.rel (0) target = $region21
  $region20: #{mlp_forward.1} parent=0 // pred_region
    _
  $region21: #{mlp_forward.1} parent=0 // pred_fallthru
    _
  // Predicated region
  $region22: #{mlp_forward.1} parent=0 // pred_check
    _
  $region23: #{mlp_forward.1} parent=0 // pred_check_branch
    %22 = sbr.rel (0) target = $region25
  $region24: #{mlp_forward.1} parent=0 // pred_region
    _
  $region25: #{mlp_forward.1} parent=0 // pred_fallthru
    _
  %v23 = vld [vmem:[%s0] sm:$0xff]
  %v24 = vld [vmem:[%s0 + $0x8] sm:$0xff]
  %v25 = vld [vmem:[%s0 + $0x10] sm:$0xff]
  %v26 = vld [vmem:[%s0 + $0x18] sm:$0xff]
  %v27 = vld [vmem:[%s0 + $0x20] sm:$0xff]
  %v28 = vld [vmem:[%s0 + $0x28] sm:$0xff]
  %v29 = vld [vmem:[%s0 + $0x30] sm:$0xff]
  %v30 = vld [vmem:[%s0 + $0x38] sm:$0xff]
  %v31 = vlaneseq
  %v32 = vand.u32 %v31, 127
  %33 = vset.pattern.permute.xlu0 0
  %34 = vperm.xlu0 %33, %v23
  %v35 = vpop.permute.xlu0 %34
  %36 = vset.pattern.permute.xlu0 0
  %37 = vperm.xlu0 %36, %v24
  %v38 = vpop.permute.xlu0 %37
  %39 = vset.pattern.permute.xlu0 0
  %40 = vperm.xlu0 %39, %v25
  %v41 = vpop.permute.xlu0 %40
  %42 = vset.pattern.permute.xlu0 0
  %43 = vperm.xlu0 %42, %v26
  %v44 = vpop.permute.xlu0 %43
  %45 = vset.pattern.permute.xlu0 0
  %46 = vperm.xlu0 %45, %v27
  %v47 = vpop.permute.xlu0 %46
  %48 = vset.pattern.permute.xlu0 0
  %49 = vperm.xlu0 %48, %v28
  %v50 = vpop.permute.xlu0 %49
  %51 = vset.pattern.permute.xlu0 0
  %52 = vperm.xlu0 %51, %v29
  %v53 = vpop.permute.xlu0 %52
  %54 = vset.pattern.permute.xlu0 0
  %55 = vperm.xlu0 %54, %v30
  %v56 = vpop.permute.xlu0 %55
  %vm57 = vcmp.eq.s32.totalorder %v32, %v35
  %vm58 = vcmp.eq.s32.totalorder %v32, %v38
  %vm59 = vcmp.eq.s32.totalorder %v32, %v41
  %vm60 = vcmp.eq.s32.totalorder %v32, %v44
  %vm61 = vcmp.eq.s32.totalorder %v32, %v47
  %vm62 = vcmp.eq.s32.totalorder %v32, %v50
  %vm63 = vcmp.eq.s32.totalorder %v32, %v53
  %vm64 = vcmp.eq.s32.totalorder %v32, %v56
  %v65 = vsel %vm57, 1, 0
  %v66 = vsel %vm58, 1, 0
  %v67 = vsel %vm59, 1, 0
  %v68 = vsel %vm60, 1, 0
  %v69 = vsel %vm61, 1, 0
  %v70 = vsel %vm62, 1, 0
  %v71 = vsel %vm63, 1, 0
  %v72 = vsel %vm64, 1, 0
  %v73 = vcvt.s32.f32 %v65
  %v74 = vcvt.s32.f32 %v66
  %v75 = vcvt.s32.f32 %v67
  %v76 = vcvt.s32.f32 %v68
  %v77 = vcvt.s32.f32 %v69
  %v78 = vcvt.s32.f32 %v70
  %v79 = vcvt.s32.f32 %v71
  %v80 = vcvt.s32.f32 %v72
  %v81 = vld [vmem:[%s1] sm:$0xff]
  %v82 = vld [vmem:[%s1 + $0x8] sm:$0xff]
  %v83 = vld [vmem:[%s1 + $0x10] sm:$0xff]
  %v84 = vld [vmem:[%s1 + $0x18] sm:$0xff]
  %v85 = vld [vmem:[%s1 + $0x20] sm:$0xff]
  %v86 = vld [vmem:[%s1 + $0x28] sm:$0xff]
  %v87 = vld [vmem:[%s1 + $0x30] sm:$0xff]
  %v88 = vld [vmem:[%s1 + $0x38] sm:$0xff]
  %v89 = vld [vmem:[%s1 + $0x40] sm:$0xff]
  %v90 = vld [vmem:[%s1 + $0x48] sm:$0xff]
  %v91 = vld [vmem:[%s1 + $0x50] sm:$0xff]
  %v92 = vld [vmem:[%s1 + $0x58] sm:$0xff]
  %v93 = vld [vmem:[%s1 + $0x60] sm:$0xff]
  %v94 = vld [vmem:[%s1 + $0x68] sm:$0xff]
  %v95 = vld [vmem:[%s1 + $0x70] sm:$0xff]
  %v96 = vld [vmem:[%s1 + $0x78] sm:$0xff]
  %97 = vmatprep.subr.mxu0 0.0
  %98 = vmatpush1.msra.mxu0 %v81
  %99 = vmatprep.subr.mxu0 0.0
  %100 = vmatpush1.msra.mxu0 %v82
  %101 = vmatprep.subr.mxu0 0.0
  %102 = vmatpush1.msra.mxu0 %v83
  %103 = vmatprep.subr.mxu0 0.0
  %104 = vmatpush1.msra.mxu0 %v84
  %105 = vmatprep.subr.mxu0 0.0
  %106 = vmatpush1.msra.mxu0 %v85
  %107 = vmatprep.subr.mxu0 0.0
  %108 = vmatpush1.msra.mxu0 %v86
  %109 = vmatprep.subr.mxu0 0.0
  %110 = vmatpush1.msra.mxu0 %v87
  %111 = vmatprep.subr.mxu0 0.0
  %112 = vmatpush1.msra.mxu0 %v88
  %113 = vmatprep.subr.mxu0 0.0
  %114 = vmatpush1.msra.mxu0 %v89
  %115 = vmatprep.subr.mxu0 0.0
  %116 = vmatpush1.msra.mxu0 %v90
  %117 = vmatprep.subr.mxu0 0.0
  %118 = vmatpush1.msra.mxu0 %v91
  %119 = vmatprep.subr.mxu0 0.0
  %120 = vmatpush1.msra.mxu0 %v92
  %121 = vmatprep.subr.mxu0 0.0
  %122 = vmatpush1.msra.mxu0 %v93
  %123 = vmatprep.subr.mxu0 0.0
  %124 = vmatpush1.msra.mxu0 %v94
  %125 = vmatprep.subr.mxu0 0.0
  %126 = vmatpush1.msra.mxu0 %v95
  %127 = vmatprep.subr.mxu0 0.0
  %128 = vmatpush1.msra.mxu0 %v96
  %129 = vmatprep.subr.mxu0 0.0
  %130 = vmatpush1.msra.mxu0 0.0
  %131 = vmatprep.subr.mxu0 0.0
  %132 = vmatpush1.msra.mxu0 0.0
  %133 = vmatprep.subr.mxu0 0.0
  %134 = vmatpush1.msra.mxu0 0.0
  %135 = vmatprep.subr.mxu0 0.0
  %136 = vmatpush1.msra.mxu0 0.0
  %137 = vmatprep.subr.mxu0 0.0
  %138 = vmatpush1.msra.mxu0 0.0
  %139 = vmatprep.subr.mxu0 0.0
  %140 = vmatpush1.msra.mxu0 0.0
  %141 = vmatprep.subr.mxu0 0.0
  %142 = vmatpush1.msra.mxu0 0.0
  %143 = vmatprep.subr.mxu0 0.0
  %144 = vmatpush1.msra.mxu0 0.0
  %145 = vmatprep.subr.mxu0 0.0
  %146 = vmatpush1.msra.mxu0 0.0
  %147 = vmatprep.subr.mxu0 0.0
  %148 = vmatpush1.msra.mxu0 0.0
  %149 = vmatprep.subr.mxu0 0.0
  %150 = vmatpush1.msra.mxu0 0.0
  %151 = vmatprep.subr.mxu0 0.0
  %152 = vmatpush1.msra.mxu0 0.0
  %153 = vmatprep.subr.mxu0 0.0
  %154 = vmatpush1.msra.mxu0 0.0
  %155 = vmatprep.subr.mxu0 0.0
  %156 = vmatpush1.msra.mxu0 0.0
  %157 = vmatprep.subr.mxu0 0.0
  %158 = vmatpush1.msra.mxu0 0.0
  %159 = vmatprep.subr.mxu0 0.0
  %160 = vmatpush1.msra.mxu0 0.0
  %161 = vmatprep.mubr.f32.mxu0 0.0
  %162 = vmatmul.mubr.f32.gmra.mrb[0].mxu0 %v73
  %v163 = vpop.f32.mrb[0].mxu0
  %v164 = vadd.f32 0.0, %v163
  %v165 = vpop.f32.mrb[0].mxu0
  %166 = vmatprep.mubr.f32.mxu0 0.0
  %167 = vmatmul.mubr.f32.gmra.mrb[0].mxu0 %v74
  %v168 = vpop.f32.mrb[0].mxu0
  %v169 = vadd.f32 0.0, %v168
  %v170 = vpop.f32.mrb[0].mxu0
  %171 = vmatprep.mubr.f32.mxu0 0.0
  %172 = vmatmul.mubr.f32.gmra.mrb[0].mxu0 %v75
  %v173 = vpop.f32.mrb[0].mxu0
  %v174 = vadd.f32 0.0, %v173
  %v175 = vpop.f32.mrb[0].mxu0
  %176 = vmatprep.mubr.f32.mxu0 0.0
  %177 = vmatmul.mubr.f32.gmra.mrb[0].mxu0 %v76
  %v178 = vpop.f32.mrb[0].mxu0
  %v179 = vadd.f32 0.0, %v178
  %v180 = vpop.f32.mrb[0].mxu0
  %181 = vmatprep.mubr.f32.mxu0 0.0
  %182 = vmatmul.mubr.f32.gmra.mrb[0].mxu0 %v77
  %v183 = vpop.f32.mrb[0].mxu0
  %v184 = vadd.f32 0.0, %v183
  %v185 = vpop.f32.mrb[0].mxu0
  %186 = vmatprep.mubr.f32.mxu0 0.0
  %187 = vmatmul.mubr.f32.gmra.mrb[0].mxu0 %v78
  %v188 = vpop.f32.mrb[0].mxu0
  %v189 = vadd.f32 0.0, %v188
  %v190 = vpop.f32.mrb[0].mxu0
  %191 = vmatprep.mubr.f32.mxu0 0.0
  %192 = vmatmul.mubr.f32.gmra.mrb[0].mxu0 %v79
  %v193 = vpop.f32.mrb[0].mxu0
  %v194 = vadd.f32 0.0, %v193
  %v195 = vpop.f32.mrb[0].mxu0
  %196 = vmatprep.mubr.f32.mxu0 0.0
  %197 = vmatmul.mubr.f32.gmra.mrb[0].mxu0 %v80
  %v198 = vpop.f32.mrb[0].mxu0
  %v199 = vadd.f32 0.0, %v198
  %v200 = vpop.f32.mrb[0].mxu0
  %201 = vdwg.mxu0
  %v202 = vld [vmem:[%s2] sm:$0xff]
  %v203 = vld [vmem:[%s2 + $0x8] sm:$0xff]
  %v204 = vld [vmem:[%s2 + $0x10] sm:$0xff]
  %v205 = vld [vmem:[%s2 + $0x18] sm:$0xff]
  %v206 = vld [vmem:[%s2 + $0x20] sm:$0xff]
  %v207 = vld [vmem:[%s2 + $0x28] sm:$0xff]
  %v208 = vld [vmem:[%s2 + $0x30] sm:$0xff]
  %v209 = vld [vmem:[%s2 + $0x38] sm:$0xff]
  %v210 = vld [vmem:[%s2 + $0x40] sm:$0xff]
  %v211 = vld [vmem:[%s2 + $0x48] sm:$0xff]
  %v212 = vld [vmem:[%s2 + $0x50] sm:$0xff]
  %v213 = vld [vmem:[%s2 + $0x58] sm:$0xff]
  %v214 = vld [vmem:[%s2 + $0x60] sm:$0xff]
  %v215 = vld [vmem:[%s2 + $0x68] sm:$0xff]
  %v216 = vld [vmem:[%s2 + $0x70] sm:$0xff]
  %v217 = vld [vmem:[%s2 + $0x78] sm:$0xff]
  %v218 = vld [vmem:[%s3] sm:$0x1]
  %v220 = vlaneseq
  %v221 = vshrl.u32 %v220, 7
  %v222 = vsub.s32 0, %v221
  %v223 = vrot.slane %v218, %v222
  %225 = vmatprep.subr.mxu0 0.0
  %226 = vmatpush1.msra.mxu0 %v202
  %227 = vmatprep.subr.mxu0 0.0
  %228 = vmatpush1.msra.mxu0 %v203
  %229 = vmatprep.subr.mxu0 0.0
  %230 = vmatpush1.msra.mxu0 %v204
  %231 = vmatprep.subr.mxu0 0.0
  %232 = vmatpush1.msra.mxu0 %v205
  %233 = vmatprep.subr.mxu0 0.0
  %234 = vmatpush1.msra.mxu0 %v206
  %235 = vmatprep.subr.mxu0 0.0
  %236 = vmatpush1.msra.mxu0 %v207
  %237 = vmatprep.subr.mxu0 0.0
  %238 = vmatpush1.msra.mxu0 %v208
  %239 = vmatprep.subr.mxu0 0.0
  %240 = vmatpush1.msra.mxu0 %v209
  %241 = vmatprep.subr.mxu0 0.0
  %242 = vmatpush1.msra.mxu0 %v210
  %243 = vmatprep.subr.mxu0 0.0
  %244 = vmatpush1.msra.mxu0 %v211
  %245 = vmatprep.subr.mxu0 0.0
  %246 = vmatpush1.msra.mxu0 %v212
  %247 = vmatprep.subr.mxu0 0.0
  %248 = vmatpush1.msra.mxu0 %v213
  %249 = vmatprep.subr.mxu0 0.0
  %250 = vmatpush1.msra.mxu0 %v214
  %251 = vmatprep.subr.mxu0 0.0
  %252 = vmatpush1.msra.mxu0 %v215
  %253 = vmatprep.subr.mxu0 0.0
  %254 = vmatpush1.msra.mxu0 %v216
  %255 = vmatprep.subr.mxu0 0.0
  %256 = vmatpush1.msra.mxu0 %v217
  %257 = vmatprep.subr.mxu0 0.0
  %258 = vmatpush1.msra.mxu0 0.0
  %259 = vmatprep.subr.mxu0 0.0
  %260 = vmatpush1.msra.mxu0 0.0
  %261 = vmatprep.subr.mxu0 0.0
  %262 = vmatpush1.msra.mxu0 0.0
  %263 = vmatprep.subr.mxu0 0.0
  %264 = vmatpush1.msra.mxu0 0.0
  %265 = vmatprep.subr.mxu0 0.0
  %266 = vmatpush1.msra.mxu0 0.0
  %267 = vmatprep.subr.mxu0 0.0
  %268 = vmatpush1.msra.mxu0 0.0
  %269 = vmatprep.subr.mxu0 0.0
  %270 = vmatpush1.msra.mxu0 0.0
  %271 = vmatprep.subr.mxu0 0.0
  %272 = vmatpush1.msra.mxu0 0.0
  %273 = vmatprep.subr.mxu0 0.0
  %274 = vmatpush1.msra.mxu0 0.0
  %275 = vmatprep.subr.mxu0 0.0
  %276 = vmatpush1.msra.mxu0 0.0
  %277 = vmatprep.subr.mxu0 0.0
  %278 = vmatpush1.msra.mxu0 0.0
  %279 = vmatprep.subr.mxu0 0.0
  %280 = vmatpush1.msra.mxu0 0.0
  %281 = vmatprep.subr.mxu0 0.0
  %282 = vmatpush1.msra.mxu0 0.0
  %283 = vmatprep.subr.mxu0 0.0
  %284 = vmatpush1.msra.mxu0 0.0
  %285 = vmatprep.subr.mxu0 0.0
  %286 = vmatpush1.msra.mxu0 0.0
  %287 = vmatprep.subr.mxu0 0.0
  %288 = vmatpush1.msra.mxu0 0.0
  %289 = vmatprep.mubr.f32.mxu0 0.0
  %290 = vmatmul.mubr.f32.gmra.mrb[0].mxu0 %v164
  %v291 = vpop.f32.mrb[0].mxu0
  %v292 = vadd.f32 %v223, %v291
  %v293 = vpop.f32.mrb[0].mxu0
  %294 = vmatprep.mubr.f32.mxu0 0.0
  %295 = vmatmul.mubr.f32.gmra.mrb[0].mxu0 %v169
  %v296 = vpop.f32.mrb[0].mxu0
  %v297 = vadd.f32 %v223, %v296
  %v298 = vpop.f32.mrb[0].mxu0
  %299 = vmatprep.mubr.f32.mxu0 0.0
  %300 = vmatmul.mubr.f32.gmra.mrb[0].mxu0 %v174
  %v301 = vpop.f32.mrb[0].mxu0
  %v302 = vadd.f32 %v223, %v301
  %v303 = vpop.f32.mrb[0].mxu0
  %304 = vmatprep.mubr.f32.mxu0 0.0
  %305 = vmatmul.mubr.f32.gmra.mrb[0].mxu0 %v179
  %v306 = vpop.f32.mrb[0].mxu0
  %v307 = vadd.f32 %v223, %v306
  %v308 = vpop.f32.mrb[0].mxu0
  %309 = vmatprep.mubr.f32.mxu0 0.0
  %310 = vmatmul.mubr.f32.gmra.mrb[0].mxu0 %v184
  %v311 = vpop.f32.mrb[0].mxu0
  %v312 = vadd.f32 %v223, %v311
  %v313 = vpop.f32.mrb[0].mxu0
  %314 = vmatprep.mubr.f32.mxu0 0.0
  %315 = vmatmul.mubr.f32.gmra.mrb[0].mxu0 %v189
  %v316 = vpop.f32.mrb[0].mxu0
  %v317 = vadd.f32 %v223, %v316
  %v318 = vpop.f32.mrb[0].mxu0
  %319 = vmatprep.mubr.f32.mxu0 0.0
  %320 = vmatmul.mubr.f32.gmra.mrb[0].mxu0 %v194
  %v321 = vpop.f32.mrb[0].mxu0
  %v322 = vadd.f32 %v223, %v321
  %v323 = vpop.f32.mrb[0].mxu0
  %324 = vmatprep.mubr.f32.mxu0 0.0
  %325 = vmatmul.mubr.f32.gmra.mrb[0].mxu0 %v199
  %v326 = vpop.f32.mrb[0].mxu0
  %v327 = vadd.f32 %v223, %v326
  %v328 = vpop.f32.mrb[0].mxu0
  %329 = vdwg.mxu0
  %v330 = vmax.f32 %v292, 0.0
  %v331 = vmax.f32 %v297, 0.0
  %v332 = vmax.f32 %v302, 0.0
  %v333 = vmax.f32 %v307, 0.0
  %v334 = vmax.f32 %v312, 0.0
  %v335 = vmax.f32 %v317, 0.0
  %v336 = vmax.f32 %v322, 0.0
  %v337 = vmax.f32 %v327, 0.0
  %v338 = vrot.slane %v330, 4
  %v339 = vmax.f32 %v330, %v338
  %v340 = vrot.slane %v339, 2
  %v341 = vmax.f32 %v339, %v340
  %v342 = vrot.slane %v341, 1
  %v343 = vmax.f32 %v341, %v342
  %v344 = vrot.slane %v331, 4
  %v345 = vmax.f32 %v331, %v344
  %v346 = vrot.slane %v345, 2
  %v347 = vmax.f32 %v345, %v346
  %v348 = vrot.slane %v347, 1
  %v349 = vmax.f32 %v347, %v348
  %v350 = vrot.slane %v332, 4
  %v351 = vmax.f32 %v332, %v350
  %v352 = vrot.slane %v351, 2
  %v353 = vmax.f32 %v351, %v352
  %v354 = vrot.slane %v353, 1
  %v355 = vmax.f32 %v353, %v354
  %v356 = vrot.slane %v333, 4
  %v357 = vmax.f32 %v333, %v356
  %v358 = vrot.slane %v357, 2
  %v359 = vmax.f32 %v357, %v358
  %v360 = vrot.slane %v359, 1
  %v361 = vmax.f32 %v359, %v360
  %v362 = vrot.slane %v334, 4
  %v363 = vmax.f32 %v334, %v362
  %v364 = vrot.slane %v363, 2
  %v365 = vmax.f32 %v363, %v364
  %v366 = vrot.slane %v365, 1
  %v367 = vmax.f32 %v365, %v366
  %v368 = vrot.slane %v335, 4
  %v369 = vmax.f32 %v335, %v368
  %v370 = vrot.slane %v369, 2
  %v371 = vmax.f32 %v369, %v370
  %v372 = vrot.slane %v371, 1
  %v373 = vmax.f32 %v371, %v372
  %v374 = vrot.slane %v336, 4
  %v375 = vmax.f32 %v336, %v374
  %v376 = vrot.slane %v375, 2
  %v377 = vmax.f32 %v375, %v376
  %v378 = vrot.slane %v377, 1
  %v379 = vmax.f32 %v377, %v378
  %v380 = vrot.slane %v337, 4
  %v381 = vmax.f32 %v337, %v380
  %v382 = vrot.slane %v381, 2
  %v383 = vmax.f32 %v381, %v382
  %v384 = vrot.slane %v383, 1
  %v385 = vmax.f32 %v383, %v384
  %v386 = vld [vmem:[%s4] sm:$0xff]
  %v387 = vld [vmem:[%s4 + $0x8] sm:$0xff]
  %v388 = vld [vmem:[%s4 + $0x10] sm:$0xff]
  %v389 = vld [vmem:[%s4 + $0x18] sm:$0xff]
  %v390 = vld [vmem:[%s4 + $0x20] sm:$0xff]
  %v391 = vld [vmem:[%s4 + $0x28] sm:$0xff]
  %v392 = vld [vmem:[%s4 + $0x30] sm:$0xff]
  %v393 = vld [vmem:[%s4 + $0x38] sm:$0xff]
  %v394 = vld [vmem:[%s4 + $0x40] sm:$0xff]
  %v395 = vld [vmem:[%s4 + $0x48] sm:$0xff]
  %v396 = vld [vmem:[%s4 + $0x50] sm:$0xff]
  %v397 = vld [vmem:[%s4 + $0x58] sm:$0xff]
  %v398 = vld [vmem:[%s4 + $0x60] sm:$0xff]
  %v399 = vld [vmem:[%s4 + $0x68] sm:$0xff]
  %v400 = vld [vmem:[%s4 + $0x70] sm:$0xff]
  %v401 = vld [vmem:[%s4 + $0x78] sm:$0xff]
  %v402 = vld [vmem:[%s5] sm:$0x1]
  %v404 = vlaneseq
  %v405 = vshrl.u32 %v404, 7
  %v406 = vsub.s32 0, %v405
  %v407 = vrot.slane %v402, %v406
  %vm417 = vcmask 1041409
  %v418 = vsel %vm417, %v349, %v343
  %vm419 = vcmask 1042434
  %v420 = vsel %vm419, %v355, %v418
  %vm421 = vcmask 1043459
  %v422 = vsel %vm421, %v361, %v420
  %vm423 = vcmask 1044484
  %v424 = vsel %vm423, %v367, %v422
  %vm425 = vcmask 1045509
  %v426 = vsel %vm425, %v373, %v424
  %vm427 = vcmask 1046534
  %v428 = vsel %vm427, %v379, %v426
  %vm429 = vcmask 1047559
  %v430 = vsel %vm429, %v385, %v428
  %432 = vmatprep.subr.mxu0 0.0
  %433 = vmatpush1.msra.mxu0 %v386
  %434 = vmatprep.subr.mxu0 0.0
  %435 = vmatpush1.msra.mxu0 %v387
  %436 = vmatprep.subr.mxu0 0.0
  %437 = vmatpush1.msra.mxu0 %v388
  %438 = vmatprep.subr.mxu0 0.0
  %439 = vmatpush1.msra.mxu0 %v389
  %440 = vmatprep.subr.mxu0 0.0
  %441 = vmatpush1.msra.mxu0 %v390
  %442 = vmatprep.subr.mxu0 0.0
  %443 = vmatpush1.msra.mxu0 %v391
  %444 = vmatprep.subr.mxu0 0.0
  %445 = vmatpush1.msra.mxu0 %v392
  %446 = vmatprep.subr.mxu0 0.0
  %447 = vmatpush1.msra.mxu0 %v393
  %448 = vmatprep.subr.mxu0 0.0
  %449 = vmatpush1.msra.mxu0 %v394
  %450 = vmatprep.subr.mxu0 0.0
  %451 = vmatpush1.msra.mxu0 %v395
  %452 = vmatprep.subr.mxu0 0.0
  %453 = vmatpush1.msra.mxu0 %v396
  %454 = vmatprep.subr.mxu0 0.0
  %455 = vmatpush1.msra.mxu0 %v397
  %456 = vmatprep.subr.mxu0 0.0
  %457 = vmatpush1.msra.mxu0 %v398
  %458 = vmatprep.subr.mxu0 0.0
  %459 = vmatpush1.msra.mxu0 %v399
  %460 = vmatprep.subr.mxu0 0.0
  %461 = vmatpush1.msra.mxu0 %v400
  %462 = vmatprep.subr.mxu0 0.0
  %463 = vmatpush1.msra.mxu0 %v401
  %464 = vmatprep.subr.mxu0 0.0
  %465 = vmatpush1.msra.mxu0 0.0
  %466 = vmatprep.subr.mxu0 0.0
  %467 = vmatpush1.msra.mxu0 0.0
  %468 = vmatprep.subr.mxu0 0.0
  %469 = vmatpush1.msra.mxu0 0.0
  %470 = vmatprep.subr.mxu0 0.0
  %471 = vmatpush1.msra.mxu0 0.0
  %472 = vmatprep.subr.mxu0 0.0
  %473 = vmatpush1.msra.mxu0 0.0
  %474 = vmatprep.subr.mxu0 0.0
  %475 = vmatpush1.msra.mxu0 0.0
  %476 = vmatprep.subr.mxu0 0.0
  %477 = vmatpush1.msra.mxu0 0.0
  %478 = vmatprep.subr.mxu0 0.0
  %479 = vmatpush1.msra.mxu0 0.0
  %480 = vmatprep.subr.mxu0 0.0
  %481 = vmatpush1.msra.mxu0 0.0
  %482 = vmatprep.subr.mxu0 0.0
  %483 = vmatpush1.msra.mxu0 0.0
  %484 = vmatprep.subr.mxu0 0.0
  %485 = vmatpush1.msra.mxu0 0.0
  %486 = vmatprep.subr.mxu0 0.0
  %487 = vmatpush1.msra.mxu0 0.0
  %488 = vmatprep.subr.mxu0 0.0
  %489 = vmatpush1.msra.mxu0 0.0
  %490 = vmatprep.subr.mxu0 0.0
  %491 = vmatpush1.msra.mxu0 0.0
  %492 = vmatprep.subr.mxu0 0.0
  %493 = vmatpush1.msra.mxu0 0.0
  %494 = vmatprep.subr.mxu0 0.0
  %495 = vmatpush1.msra.mxu0 0.0
  %496 = vmatprep.mubr.f32.mxu0 0.0
  %497 = vmatmul.mubr.f32.gmra.mrb[0].mxu0 %v430
  %v498 = vpop.f32.mrb[0].mxu0
  %v499 = vadd.f32 %v407, %v498
  %v500 = vpop.f32.mrb[0].mxu0
  %501 = vdwg.mxu0
  %502 = vst [vmem:[%s6] sm:$0xff] %v499
  // Predicated region
  $region26: #{mlp_forward.1} parent=0 // pred_check
    _
  $region27: #{mlp_forward.1} parent=0 // pred_check_branch
    %504 = sbr.rel (0) target = $region29
  $region28: #{mlp_forward.1} parent=0 // pred_region
    _
  $region29: #{mlp_forward.1} parent=0 // pred_fallthru
    _
  // Predicated region
  $region30: #{mlp_forward.1} parent=0 // pred_check
    _
  $region31: #{mlp_forward.1} parent=0 // pred_check_branch
    %506 = sbr.rel (0) target = $region33
  $region32: #{mlp_forward.1} parent=0 // pred_region
    _
  $region33: #{mlp_forward.1} parent=0 // pred_fallthru
    _

</llo_original>
